<compile_context>
chip_gen: v5e
topology: v5e:2x2
jax: 0.10.0
libtpu: 0.0.40
codegen_flags: <defaults>
</compile_context>

<pallas_src>
from functools import partial

import jax
import jax.numpy as jnp
from jax.experimental import pallas as pl
from jax.experimental.pallas import tpu as pltpu

# constants from the torch module
NUM_BOND_TYPE = 6
NUM_BOND_DIRECTION = 3
NUM_ATOM_TYPE = 120
NUM_CHIRALITY_TAG = 3


# ------------------------------ Pallas kernel ------------------------------

def fused_se_kernel(src_ref, tgt_ref, sub_ref, x_ref,
                    eemb_ref, sle_ref, w1_ref, b1_ref, w2_ref, b2_ref,
                    out_ref):
    # shapes (all padded): x:[N,D], src:[E,1], tgt:[1,E], sub:[1,N],
    # eemb:[L,E,D], sle:[L,1,D], w1:[L,D,H], b1:[L,1,H], w2:[L,H,D], b2:[L,1,D]
    N, D = x_ref.shape
    E = tgt_ref.shape[1]
    M = out_ref.shape[0]
    L = eemb_ref.shape[0]

    # In-kernel incidence construction (bf16 is exact for 0/1 values).
    # Padded edges / nodes carry sentinel index -1 so they never match.
    tgt = tgt_ref[...]                                             # (1, E)
    src = src_ref[...]                                             # (E, 1)
    node_vs_edge = jax.lax.broadcasted_iota(jnp.int32, (N, E), 0)
    T = (node_vs_edge == tgt).astype(jnp.bfloat16)                 # [N, E] scatter-to-target
    edge_vs_node = jax.lax.broadcasted_iota(jnp.int32, (E, N), 1)
    G = (edge_vs_node == src).astype(jnp.bfloat16)                 # [E, N] gather-from-source

    h = x_ref[...].astype(jnp.float32)                             # [N, D] on-chip state

    for l in range(L):                                             # static unroll (L=2)
        h_bf = h.astype(jnp.bfloat16)
        # message: x_src + edge_emb (real edges only; padded edges masked by T)
        msg = (jnp.dot(G, h_bf, preferred_element_type=jnp.float32)
               + eemb_ref[l].astype(jnp.float32))                  # [E, D]
        # aggregate to targets + analytic self-loop term (x_i + self_loop_emb)
        agg = (jnp.dot(T, msg.astype(jnp.bfloat16),
                       preferred_element_type=jnp.float32)
               + h + sle_ref[l])                                   # [N, D]
        # GIN MLP: Linear(D,2D) -> ReLU -> Linear(2D,D); bf16 operands, f32 acc
        hid = (jnp.dot(agg.astype(jnp.bfloat16), w1_ref[l],
                       preferred_element_type=jnp.float32) + b1_ref[l])
        hid = jnp.maximum(hid, 0.0)
        out = (jnp.dot(hid.astype(jnp.bfloat16), w2_ref[l],
                       preferred_element_type=jnp.float32) + b2_ref[l])
        # outer ReLU applied by StructureExtractor around every GIN layer
        h = jnp.maximum(out, 0.0)

    # khopgnn subgraph pooling: scatter_add via one-hot [M, N] built in-kernel
    sub = sub_ref[...]                                             # (1, N)
    pool_vs_node = jax.lax.broadcasted_iota(jnp.int32, (M, N), 0)
    S = (pool_vs_node == sub).astype(jnp.bfloat16)                 # [M, N]
    out_ref[...] = jnp.dot(S, h.astype(jnp.bfloat16),
                           preferred_element_type=jnp.float32)


def _vmem_specs(n):
    return [pl.BlockSpec(memory_space=pltpu.MemorySpace.VMEM) for _ in range(n)]


def _round_up(x, m):
    return ((x + m - 1) // m) * m


def _pad2(a, rows, cols):
    return jnp.pad(a, ((0, rows - a.shape[0]), (0, cols - a.shape[1])))


# ------------------------- parameter initialization ------------------------

def xavier_uniform(key, shape):
    bound = (6.0 / (shape[0] + shape[1])) ** 0.5
    return jax.random.uniform(key, shape, jnp.float32, -bound, bound)


def init_params(key, embed_dim, num_layers):
    keys = jax.random.split(key, 2 + num_layers)
    params = {
        "x_embedding1": xavier_uniform(keys[0], (NUM_ATOM_TYPE, embed_dim)),
        "x_embedding2": xavier_uniform(keys[1], (NUM_CHIRALITY_TAG, embed_dim)),
        "gin": [],
    }
    for l in range(num_layers):
        k = jax.random.split(keys[2 + l], 6)
        lim1 = 1.0 / (embed_dim ** 0.5)
        lim2 = 1.0 / ((2 * embed_dim) ** 0.5)
        params["gin"].append({
            "edge_embedding1": xavier_uniform(k[0], (NUM_BOND_TYPE, embed_dim)),
            "edge_embedding2": xavier_uniform(k[1], (NUM_BOND_DIRECTION, embed_dim)),
            # stored as [in, out]; equivalent to torch Linear y = x @ W.T + b
            "w1": jax.random.uniform(k[2], (embed_dim, 2 * embed_dim),
                                     jnp.float32, -lim1, lim1),
            "b1": jax.random.uniform(k[3], (1, 2 * embed_dim),
                                     jnp.float32, -lim1, lim1),
            "w2": jax.random.uniform(k[4], (2 * embed_dim, embed_dim),
                                     jnp.float32, -lim2, lim2),
            "b2": jax.random.uniform(k[5], (1, embed_dim),
                                     jnp.float32, -lim2, lim2),
        })
    return params


# ------------------------------- forward pass ------------------------------

@partial(jax.jit, static_argnums=(6,))
def structure_extractor_forward(params, origin_x, x, edge_index, edge_attr,
                                subgraph_indicator_index, num_pool_out):
    # node embedding lookups (glue: gathers stay in XLA)
    x_h = params["x_embedding1"][x[:, 0]] + params["x_embedding2"][x[:, 1]]
    origin_h = (params["x_embedding1"][origin_x[:, 0]]
                + params["x_embedding2"][origin_x[:, 1]])

    N, D = x_h.shape
    E = edge_index.shape[1]
    H = 2 * D
    M = num_pool_out

    # pad feature dims to 128 lanes, row dims to 16 (bf16 sublane packing)
    D_pad = _round_up(D, 128)
    H_pad = _round_up(H, 128)
    N_pad = _round_up(N, 16)
    E_pad = _round_up(E, 16)
    M_pad = _round_up(M, 16)

    # int32 index vectors with -1 sentinels for padded rows (never match iota)
    src = jnp.full((E_pad, 1), -1, jnp.int32).at[:E, 0].set(
        edge_index[0].astype(jnp.int32))
    tgt = jnp.full((1, E_pad), -1, jnp.int32).at[0, :E].set(
        edge_index[1].astype(jnp.int32))
    sub = jnp.full((1, N_pad), -1, jnp.int32).at[0, :N].set(
        subgraph_indicator_index.astype(jnp.int32))

    x_p = _pad2(x_h.astype(jnp.bfloat16), N_pad, D_pad)

    eemb, sle, w1, b1, w2, b2 = [], [], [], [], [], []
    for lp in params["gin"]:
        # per-layer edge embedding lookup (real edges only; self loop is folded
        # analytically as edge_embedding1[4] + edge_embedding2[0])
        e = lp["edge_embedding1"][edge_attr[:, 0]] + lp["edge_embedding2"][edge_attr[:, 1]]
        eemb.append(_pad2(e.astype(jnp.bfloat16), E_pad, D_pad))
        s = (lp["edge_embedding1"][4] + lp["edge_embedding2"][0])[None, :]
        sle.append(_pad2(s, 1, D_pad))
        w1.append(_pad2(lp["w1"].astype(jnp.bfloat16), D_pad, H_pad))
        b1.append(_pad2(lp["b1"], 1, H_pad))
        w2.append(_pad2(lp["w2"].astype(jnp.bfloat16), H_pad, D_pad))
        b2.append(_pad2(lp["b2"], 1, D_pad))
    eemb = jnp.stack(eemb)
    sle = jnp.stack(sle)
    w1 = jnp.stack(w1)
    b1 = jnp.stack(b1)
    w2 = jnp.stack(w2)
    b2 = jnp.stack(b2)

    pooled_pad = pl.pallas_call(
        fused_se_kernel,
        out_shape=jax.ShapeDtypeStruct((M_pad, D_pad), jnp.float32),
        in_specs=_vmem_specs(10),
        out_specs=pl.BlockSpec(memory_space=pltpu.MemorySpace.VMEM),
    )(src, tgt, sub, x_p, eemb, sle, w1, b1, w2, b2)

    return origin_h, pooled_pad[:M, :D]


# ------------------------- pure-JAX f32 reference ---------------------------

def reference_forward(params, origin_x, x, edge_index, edge_attr,
                      subgraph_indicator_index, num_pool_out):
    x_h = params["x_embedding1"][x[:, 0]] + params["x_embedding2"][x[:, 1]]
    origin_h = (params["x_embedding1"][origin_x[:, 0]]
                + params["x_embedding2"][origin_x[:, 1]])
    src, tgt = edge_index[0], edge_index[1]
    h = x_h
    for lp in params["gin"]:
        eemb = lp["edge_embedding1"][edge_attr[:, 0]] + lp["edge_embedding2"][edge_attr[:, 1]]
        sle = lp["edge_embedding1"][4] + lp["edge_embedding2"][0]
        msg = h[src] + eemb
        agg = jnp.zeros_like(h).at[tgt].add(msg) + h + sle[None, :]
        hid = jnp.maximum(agg @ lp["w1"] + lp["b1"], 0.0)
        h = jnp.maximum(hid @ lp["w2"] + lp["b2"], 0.0)
    pooled = jnp.zeros((num_pool_out, h.shape[1]), h.dtype).at[
        subgraph_indicator_index].add(h)
    return origin_h, pooled


# ----------------------------------- main -----------------------------------

if __name__ == "__main__":
    key = jax.random.PRNGKey(0)
    embed_dim = 32
    num_layers = 2
    n_orig = 8      # original graph nodes (pooling targets / origin_x rows)
    n_sub = 16      # expanded k-subtree nodes
    n_edges = 24    # edges of the expanded subgraph

    k_par, k1, k2, k3, k4, k5, k6, k7 = jax.random.split(key, 8)
    params = init_params(k_par, embed_dim, num_layers)

    x = jnp.stack([jax.random.randint(k1, (n_sub,), 0, NUM_ATOM_TYPE),
                   jax.random.randint(k2, (n_sub,), 0, NUM_CHIRALITY_TAG)], axis=1)
    origin_x = jnp.stack([jax.random.randint(k3, (n_orig,), 0, NUM_ATOM_TYPE),
                          jax.random.randint(k4, (n_orig,), 0, NUM_CHIRALITY_TAG)], axis=1)
    edge_index = jax.random.randint(k5, (2, n_edges), 0, n_sub)
    edge_attr = jnp.stack([jax.random.randint(k6, (n_edges,), 0, NUM_BOND_TYPE - 2),
                           jax.random.randint(k7, (n_edges,), 0, NUM_BOND_DIRECTION)],
                          axis=1)
    # each original node is the center of (n_sub // n_orig) expanded nodes
    subgraph_indicator_index = jnp.repeat(jnp.arange(n_orig), n_sub // n_orig)

    origin_h, pooled = structure_extractor_forward(
        params, origin_x, x, edge_index, edge_attr,
        subgraph_indicator_index, n_orig)
    jax.block_until_ready((origin_h, pooled))

    assert origin_h.shape == (n_orig, embed_dim)
    assert pooled.shape == (n_orig, embed_dim)

    # verify against f32 reference (bf16 MXU operands -> loose tolerance)
    ref_origin, ref_pooled = reference_forward(
        params, origin_x, x, edge_index, edge_attr,
        subgraph_indicator_index, n_orig)
    assert jnp.allclose(origin_h, ref_origin, rtol=1e-5, atol=1e-5)
    assert jnp.allclose(pooled, ref_pooled, rtol=5e-2, atol=5e-2)

    print("KERNEL_OK")
</pallas_src>

<mosaic_0001>
module attributes {stable_mosaic.version = 11 : i64} {
  func.func @fused_se_kernel(%arg0: memref<32x1xi32, #tpu.memory_space<vmem>>, %arg1: memref<1x32xi32, #tpu.memory_space<vmem>>, %arg2: memref<1x16xi32, #tpu.memory_space<vmem>>, %arg3: memref<16x128xbf16, #tpu.memory_space<vmem>>, %arg4: memref<2x32x128xbf16, #tpu.memory_space<vmem>>, %arg5: memref<2x1x128xf32, #tpu.memory_space<vmem>>, %arg6: memref<2x128x128xbf16, #tpu.memory_space<vmem>>, %arg7: memref<2x1x128xf32, #tpu.memory_space<vmem>>, %arg8: memref<2x128x128xbf16, #tpu.memory_space<vmem>>, %arg9: memref<2x1x128xf32, #tpu.memory_space<vmem>>, %arg10: memref<16x128xf32, #tpu.memory_space<vmem>>) attributes {dimension_semantics = [], scalar_prefetch = 0 : i64, scratch_operands = 0 : i64, tpu.core_type = #tpu.core_type<tc>} {
    %c0 = arith.constant 0 : index
    %c0_0 = arith.constant 0 : index
    %0 = vector.load %arg1[%c0, %c0_0] : memref<1x32xi32, #tpu.memory_space<vmem>>, vector<1x32xi32>
    %c0_1 = arith.constant 0 : index
    %c0_2 = arith.constant 0 : index
    %1 = vector.load %arg0[%c0_1, %c0_2] : memref<32x1xi32, #tpu.memory_space<vmem>>, vector<32x1xi32>
    %2 = tpu.iota {dimensions = array<i32: 0>} : vector<16x32xi32>
    %3 = vector.broadcast %0 : vector<1x32xi32> to vector<16x32xi32>
    %4 = arith.cmpi eq, %2, %3 : vector<16x32xi32>
    %5 = arith.extui %4 : vector<16x32xi1> to vector<16x32xi32>
    %6 = arith.sitofp %5 : vector<16x32xi32> to vector<16x32xf32>
    %7 = arith.truncf %6 : vector<16x32xf32> to vector<16x32xbf16>
    %8 = tpu.iota {dimensions = array<i32: 1>} : vector<32x16xi32>
    %9 = vector.broadcast %1 : vector<32x1xi32> to vector<32x16xi32>
    %10 = arith.cmpi eq, %8, %9 : vector<32x16xi32>
    %11 = arith.extui %10 : vector<32x16xi1> to vector<32x16xi32>
    %12 = arith.sitofp %11 : vector<32x16xi32> to vector<32x16xf32>
    %13 = arith.truncf %12 : vector<32x16xf32> to vector<32x16xbf16>
    %c0_3 = arith.constant 0 : index
    %c0_4 = arith.constant 0 : index
    %14 = vector.load %arg3[%c0_3, %c0_4] : memref<16x128xbf16, #tpu.memory_space<vmem>>, vector<16x128xbf16>
    %15 = arith.extf %14 : vector<16x128xbf16> to vector<16x128xf32>
    %16 = arith.truncf %15 : vector<16x128xf32> to vector<16x128xbf16>
    %cst = arith.constant dense<0.000000e+00> : vector<32x128xf32>
    %17 = tpu.matmul %13, %16, %cst {dimension_numbers = #tpu.dot_dimension_numbers<[1], [0], [0], [1], [0, 0, 1, 1], [], []>} : vector<32x16xbf16>, vector<16x128xbf16>, vector<32x128xf32> -> vector<32x128xf32>
    %c0_5 = arith.constant 0 : index
    %c0_6 = arith.constant 0 : index
    %c0_7 = arith.constant 0 : index
    %18 = vector.load %arg4[%c0_5, %c0_6, %c0_7] : memref<2x32x128xbf16, #tpu.memory_space<vmem>>, vector<1x32x128xbf16>
    %19 = vector.shape_cast %18 : vector<1x32x128xbf16> to vector<32x128xbf16>
    %20 = arith.extf %19 : vector<32x128xbf16> to vector<32x128xf32>
    %21 = arith.addf %17, %20 : vector<32x128xf32>
    %22 = arith.truncf %21 : vector<32x128xf32> to vector<32x128xbf16>
    %cst_8 = arith.constant dense<0.000000e+00> : vector<16x128xf32>
    %23 = tpu.matmul %7, %22, %cst_8 {dimension_numbers = #tpu.dot_dimension_numbers<[1], [0], [0], [1], [0, 0, 1, 1], [], []>} : vector<16x32xbf16>, vector<32x128xbf16>, vector<16x128xf32> -> vector<16x128xf32>
    %24 = arith.addf %23, %15 : vector<16x128xf32>
    %c0_9 = arith.constant 0 : index
    %c0_10 = arith.constant 0 : index
    %c0_11 = arith.constant 0 : index
    %25 = vector.load %arg5[%c0_9, %c0_10, %c0_11] : memref<2x1x128xf32, #tpu.memory_space<vmem>>, vector<1x1x128xf32>
    %26 = vector.shape_cast %25 : vector<1x1x128xf32> to vector<1x128xf32>
    %27 = vector.broadcast %26 : vector<1x128xf32> to vector<16x128xf32>
    %28 = arith.addf %24, %27 : vector<16x128xf32>
    %29 = arith.truncf %28 : vector<16x128xf32> to vector<16x128xbf16>
    %c0_12 = arith.constant 0 : index
    %c0_13 = arith.constant 0 : index
    %c0_14 = arith.constant 0 : index
    %30 = vector.load %arg6[%c0_12, %c0_13, %c0_14] : memref<2x128x128xbf16, #tpu.memory_space<vmem>>, vector<1x128x128xbf16>
    %31 = vector.shape_cast %30 : vector<1x128x128xbf16> to vector<128x128xbf16>
    %cst_15 = arith.constant dense<0.000000e+00> : vector<16x128xf32>
    %32 = tpu.matmul %29, %31, %cst_15 {dimension_numbers = #tpu.dot_dimension_numbers<[1], [0], [0], [1], [0, 0, 1, 1], [], []>} : vector<16x128xbf16>, vector<128x128xbf16>, vector<16x128xf32> -> vector<16x128xf32>
    %c0_16 = arith.constant 0 : index
    %c0_17 = arith.constant 0 : index
    %c0_18 = arith.constant 0 : index
    %33 = vector.load %arg7[%c0_16, %c0_17, %c0_18] : memref<2x1x128xf32, #tpu.memory_space<vmem>>, vector<1x1x128xf32>
    %34 = vector.shape_cast %33 : vector<1x1x128xf32> to vector<1x128xf32>
    %35 = vector.broadcast %34 : vector<1x128xf32> to vector<16x128xf32>
    %36 = arith.addf %32, %35 : vector<16x128xf32>
    %cst_19 = arith.constant 0.000000e+00 : f32
    %37 = vector.broadcast %cst_19 : f32 to vector<16x128xf32>
    %38 = arith.maximumf %36, %37 : vector<16x128xf32>
    %39 = arith.truncf %38 : vector<16x128xf32> to vector<16x128xbf16>
    %c0_20 = arith.constant 0 : index
    %c0_21 = arith.constant 0 : index
    %c0_22 = arith.constant 0 : index
    %40 = vector.load %arg8[%c0_20, %c0_21, %c0_22] : memref<2x128x128xbf16, #tpu.memory_space<vmem>>, vector<1x128x128xbf16>
    %41 = vector.shape_cast %40 : vector<1x128x128xbf16> to vector<128x128xbf16>
    %cst_23 = arith.constant dense<0.000000e+00> : vector<16x128xf32>
    %42 = tpu.matmul %39, %41, %cst_23 {dimension_numbers = #tpu.dot_dimension_numbers<[1], [0], [0], [1], [0, 0, 1, 1], [], []>} : vector<16x128xbf16>, vector<128x128xbf16>, vector<16x128xf32> -> vector<16x128xf32>
    %c0_24 = arith.constant 0 : index
    %c0_25 = arith.constant 0 : index
    %c0_26 = arith.constant 0 : index
    %43 = vector.load %arg9[%c0_24, %c0_25, %c0_26] : memref<2x1x128xf32, #tpu.memory_space<vmem>>, vector<1x1x128xf32>
    %44 = vector.shape_cast %43 : vector<1x1x128xf32> to vector<1x128xf32>
    %45 = vector.broadcast %44 : vector<1x128xf32> to vector<16x128xf32>
    %46 = arith.addf %42, %45 : vector<16x128xf32>
    %cst_27 = arith.constant 0.000000e+00 : f32
    %47 = vector.broadcast %cst_27 : f32 to vector<16x128xf32>
    %48 = arith.maximumf %46, %47 : vector<16x128xf32>
    %49 = arith.truncf %48 : vector<16x128xf32> to vector<16x128xbf16>
    %cst_28 = arith.constant dense<0.000000e+00> : vector<32x128xf32>
    %50 = tpu.matmul %13, %49, %cst_28 {dimension_numbers = #tpu.dot_dimension_numbers<[1], [0], [0], [1], [0, 0, 1, 1], [], []>} : vector<32x16xbf16>, vector<16x128xbf16>, vector<32x128xf32> -> vector<32x128xf32>
    %c1 = arith.constant 1 : index
    %c0_29 = arith.constant 0 : index
    %c0_30 = arith.constant 0 : index
    %51 = vector.load %arg4[%c1, %c0_29, %c0_30] : memref<2x32x128xbf16, #tpu.memory_space<vmem>>, vector<1x32x128xbf16>
    %52 = vector.shape_cast %51 : vector<1x32x128xbf16> to vector<32x128xbf16>
    %53 = arith.extf %52 : vector<32x128xbf16> to vector<32x128xf32>
    %54 = arith.addf %50, %53 : vector<32x128xf32>
    %55 = arith.truncf %54 : vector<32x128xf32> to vector<32x128xbf16>
    %cst_31 = arith.constant dense<0.000000e+00> : vector<16x128xf32>
    %56 = tpu.matmul %7, %55, %cst_31 {dimension_numbers = #tpu.dot_dimension_numbers<[1], [0], [0], [1], [0, 0, 1, 1], [], []>} : vector<16x32xbf16>, vector<32x128xbf16>, vector<16x128xf32> -> vector<16x128xf32>
    %57 = arith.addf %56, %48 : vector<16x128xf32>
    %c1_32 = arith.constant 1 : index
    %c0_33 = arith.constant 0 : index
    %c0_34 = arith.constant 0 : index
    %58 = vector.load %arg5[%c1_32, %c0_33, %c0_34] : memref<2x1x128xf32, #tpu.memory_space<vmem>>, vector<1x1x128xf32>
    %59 = vector.shape_cast %58 : vector<1x1x128xf32> to vector<1x128xf32>
    %60 = vector.broadcast %59 : vector<1x128xf32> to vector<16x128xf32>
    %61 = arith.addf %57, %60 : vector<16x128xf32>
    %62 = arith.truncf %61 : vector<16x128xf32> to vector<16x128xbf16>
    %c1_35 = arith.constant 1 : index
    %c0_36 = arith.constant 0 : index
    %c0_37 = arith.constant 0 : index
    %63 = vector.load %arg6[%c1_35, %c0_36, %c0_37] : memref<2x128x128xbf16, #tpu.memory_space<vmem>>, vector<1x128x128xbf16>
    %64 = vector.shape_cast %63 : vector<1x128x128xbf16> to vector<128x128xbf16>
    %cst_38 = arith.constant dense<0.000000e+00> : vector<16x128xf32>
    %65 = tpu.matmul %62, %64, %cst_38 {dimension_numbers = #tpu.dot_dimension_numbers<[1], [0], [0], [1], [0, 0, 1, 1], [], []>} : vector<16x128xbf16>, vector<128x128xbf16>, vector<16x128xf32> -> vector<16x128xf32>
    %c1_39 = arith.constant 1 : index
    %c0_40 = arith.constant 0 : index
    %c0_41 = arith.constant 0 : index
    %66 = vector.load %arg7[%c1_39, %c0_40, %c0_41] : memref<2x1x128xf32, #tpu.memory_space<vmem>>, vector<1x1x128xf32>
    %67 = vector.shape_cast %66 : vector<1x1x128xf32> to vector<1x128xf32>
    %68 = vector.broadcast %67 : vector<1x128xf32> to vector<16x128xf32>
    %69 = arith.addf %65, %68 : vector<16x128xf32>
    %cst_42 = arith.constant 0.000000e+00 : f32
    %70 = vector.broadcast %cst_42 : f32 to vector<16x128xf32>
    %71 = arith.maximumf %69, %70 : vector<16x128xf32>
    %72 = arith.truncf %71 : vector<16x128xf32> to vector<16x128xbf16>
    %c1_43 = arith.constant 1 : index
    %c0_44 = arith.constant 0 : index
    %c0_45 = arith.constant 0 : index
    %73 = vector.load %arg8[%c1_43, %c0_44, %c0_45] : memref<2x128x128xbf16, #tpu.memory_space<vmem>>, vector<1x128x128xbf16>
    %74 = vector.shape_cast %73 : vector<1x128x128xbf16> to vector<128x128xbf16>
    %cst_46 = arith.constant dense<0.000000e+00> : vector<16x128xf32>
    %75 = tpu.matmul %72, %74, %cst_46 {dimension_numbers = #tpu.dot_dimension_numbers<[1], [0], [0], [1], [0, 0, 1, 1], [], []>} : vector<16x128xbf16>, vector<128x128xbf16>, vector<16x128xf32> -> vector<16x128xf32>
    %c1_47 = arith.constant 1 : index
    %c0_48 = arith.constant 0 : index
    %c0_49 = arith.constant 0 : index
    %76 = vector.load %arg9[%c1_47, %c0_48, %c0_49] : memref<2x1x128xf32, #tpu.memory_space<vmem>>, vector<1x1x128xf32>
    %77 = vector.shape_cast %76 : vector<1x1x128xf32> to vector<1x128xf32>
    %78 = vector.broadcast %77 : vector<1x128xf32> to vector<16x128xf32>
    %79 = arith.addf %75, %78 : vector<16x128xf32>
    %cst_50 = arith.constant 0.000000e+00 : f32
    %80 = vector.broadcast %cst_50 : f32 to vector<16x128xf32>
    %81 = arith.maximumf %79, %80 : vector<16x128xf32>
    %c0_51 = arith.constant 0 : index
    %c0_52 = arith.constant 0 : index
    %82 = vector.load %arg2[%c0_51, %c0_52] : memref<1x16xi32, #tpu.memory_space<vmem>>, vector<1x16xi32>
    %83 = tpu.iota {dimensions = array<i32: 0>} : vector<16x16xi32>
    %84 = vector.broadcast %82 : vector<1x16xi32> to vector<16x16xi32>
    %85 = arith.cmpi eq, %83, %84 : vector<16x16xi32>
    %86 = arith.extui %85 : vector<16x16xi1> to vector<16x16xi32>
    %87 = arith.sitofp %86 : vector<16x16xi32> to vector<16x16xf32>
    %88 = arith.truncf %87 : vector<16x16xf32> to vector<16x16xbf16>
    %89 = arith.truncf %81 : vector<16x128xf32> to vector<16x128xbf16>
    %cst_53 = arith.constant dense<0.000000e+00> : vector<16x128xf32>
    %90 = tpu.matmul %88, %89, %cst_53 {dimension_numbers = #tpu.dot_dimension_numbers<[1], [0], [0], [1], [0, 0, 1, 1], [], []>} : vector<16x16xbf16>, vector<16x128xbf16>, vector<16x128xf32> -> vector<16x128xf32>
    %c0_54 = arith.constant 0 : index
    %c0_55 = arith.constant 0 : index
    %91 = vector.load %arg10[%c0_54, %c0_55] : memref<16x128xf32, #tpu.memory_space<vmem>>, vector<16x128xf32>
    tpu.vector_store %arg10[%c0_54, %c0_55], %90 {strides = array<i32>} : memref<16x128xf32, #tpu.memory_space<vmem>>, vector<16x128xf32>,
    return
  }
}

</mosaic_0001>

<llo_original>
// kernel: structure_extractor_forward.1
$region0: #{structure_extractor_forward.1}
  #allocation0 [shape = 'u32[]', space=smem, size = 0x4, offset = 0x4, fixed_abs, tag = 'smem constant byte address 0x4 - core index']
  #allocation1 [shape = 'u32[72,128]{1,0:T(1,128)}', space=vmem, size = 0x9000, scoped, tag = 'internal scratch']
  %s0 = inlined_call_operand.vmem [shape: s32[32,1], index: 0, kind: input, shape index: {}]
  %s1 = inlined_call_operand.vmem [shape: s32[1,32], index: 1, kind: input, shape index: {}]
  %s2 = inlined_call_operand.vmem [shape: s32[1,16], index: 2, kind: input, shape index: {}]
  %s3 = inlined_call_operand.vmem [shape: bf16[16,128], index: 3, kind: input, shape index: {}]
  %s4 = inlined_call_operand.vmem [shape: bf16[2,32,128], index: 4, kind: input, shape index: {}]
  %s5 = inlined_call_operand.vmem [shape: f32[2,1,128], index: 5, kind: input, shape index: {}]
  %s6 = inlined_call_operand.vmem [shape: bf16[2,128,128], index: 6, kind: input, shape index: {}]
  %s7 = inlined_call_operand.vmem [shape: f32[2,1,128], index: 7, kind: input, shape index: {}]
  %s8 = inlined_call_operand.vmem [shape: bf16[2,128,128], index: 8, kind: input, shape index: {}]
  %s9 = inlined_call_operand.vmem [shape: f32[2,1,128], index: 9, kind: input, shape index: {}]
  %s10 = inlined_call_operand.vmem [shape: f32[16,128], index: 10, kind: output, shape index: {}]
  %s11 = sld [smem:[#allocation0]]
  $region50: #{structure_extractor_forward.1} parent=0
    _
  %s13 = ssub.s32 1, %s11
  %s14 = scalar_select 0, %s13, %s11
  // Predicated region
  $region2: #{structure_extractor_forward.1} parent=0 // pred_check
    _
  $region3: #{structure_extractor_forward.1} parent=0 // pred_check_branch
    %16 = sbr.rel (0) target = $region5
  $region4: #{structure_extractor_forward.1} parent=0 // pred_region
    _
  $region5: #{structure_extractor_forward.1} parent=0 // pred_fallthru
    _
  // Predicated region
  $region6: #{structure_extractor_forward.1} parent=0 // pred_check
    _
  $region7: #{structure_extractor_forward.1} parent=0 // pred_check_branch
    %18 = sbr.rel (0) target = $region9
  $region8: #{structure_extractor_forward.1} parent=0 // pred_region
    _
  $region9: #{structure_extractor_forward.1} parent=0 // pred_fallthru
    _
  // Predicated region
  $region10: #{structure_extractor_forward.1} parent=0 // pred_check
    _
  $region11: #{structure_extractor_forward.1} parent=0 // pred_check_branch
    %20 = sbr.rel (0) target = $region13
  $region12: #{structure_extractor_forward.1} parent=0 // pred_region
    _
  $region13: #{structure_extractor_forward.1} parent=0 // pred_fallthru
    _
  // Predicated region
  $region14: #{structure_extractor_forward.1} parent=0 // pred_check
    _
  $region15: #{structure_extractor_forward.1} parent=0 // pred_check_branch
    %22 = sbr.rel (0) target = $region17
  $region16: #{structure_extractor_forward.1} parent=0 // pred_region
    _
  $region17: #{structure_extractor_forward.1} parent=0 // pred_fallthru
    _
  // Predicated region
  $region18: #{structure_extractor_forward.1} parent=0 // pred_check
    _
  $region19: #{structure_extractor_forward.1} parent=0 // pred_check_branch
    %24 = sbr.rel (0) target = $region21
  $region20: #{structure_extractor_forward.1} parent=0 // pred_region
    _
  $region21: #{structure_extractor_forward.1} parent=0 // pred_fallthru
    _
  // Predicated region
  $region22: #{structure_extractor_forward.1} parent=0 // pred_check
    _
  $region23: #{structure_extractor_forward.1} parent=0 // pred_check_branch
    %26 = sbr.rel (0) target = $region25
  $region24: #{structure_extractor_forward.1} parent=0 // pred_region
    _
  $region25: #{structure_extractor_forward.1} parent=0 // pred_fallthru
    _
  // Predicated region
  $region26: #{structure_extractor_forward.1} parent=0 // pred_check
    _
  $region27: #{structure_extractor_forward.1} parent=0 // pred_check_branch
    %28 = sbr.rel (0) target = $region29
  $region28: #{structure_extractor_forward.1} parent=0 // pred_region
    _
  $region29: #{structure_extractor_forward.1} parent=0 // pred_fallthru
    _
  // Predicated region
  $region30: #{structure_extractor_forward.1} parent=0 // pred_check
    _
  $region31: #{structure_extractor_forward.1} parent=0 // pred_check_branch
    %30 = sbr.rel (0) target = $region33
  $region32: #{structure_extractor_forward.1} parent=0 // pred_region
    _
  $region33: #{structure_extractor_forward.1} parent=0 // pred_fallthru
    _
  // Predicated region
  $region34: #{structure_extractor_forward.1} parent=0 // pred_check
    _
  $region35: #{structure_extractor_forward.1} parent=0 // pred_check_branch
    %32 = sbr.rel (0) target = $region37
  $region36: #{structure_extractor_forward.1} parent=0 // pred_region
    _
  $region37: #{structure_extractor_forward.1} parent=0 // pred_fallthru
    _
  // Predicated region
  $region38: #{structure_extractor_forward.1} parent=0 // pred_check
    _
  $region39: #{structure_extractor_forward.1} parent=0 // pred_check_branch
    %34 = sbr.rel (0) target = $region41
  $region40: #{structure_extractor_forward.1} parent=0 // pred_region
    _
  $region41: #{structure_extractor_forward.1} parent=0 // pred_fallthru
    _
  %v36 = vld [vmem:[%s1] sm:$0x1]
  %v37 = vld [vmem:[%s0] sm:$0xff]
  %v38 = vld [vmem:[%s0 + $0x8] sm:$0xff]
  %v39 = vld [vmem:[%s0 + $0x10] sm:$0xff]
  %v40 = vld [vmem:[%s0 + $0x18] sm:$0xff]
  %v41 = vlaneseq
  %v42 = vshrl.u32 %v41, 7
  %v43 = vadd.s32 %v42, 8
  %v44 = vperm.slane %v36, 0
  %vm45 = vcmp.eq.s32.totalorder %v42, %v44
  %vm46 = vcmp.eq.s32.totalorder %v43, %v44
  %v47 = vsel %vm45, 1, 0
  %v48 = vsel %vm46, 1, 0
  %v49 = vcvt.s32.f32 %v47
  %v50 = vcvt.s32.f32 %v48
  %v51 = vpack.c.bf16 %v50, %v49
  %v52 = vlaneseq
  %v53 = vand.u32 %v52, 127
  %54 = vset.pattern.permute.xlu0 0
  %55 = vperm.xlu0 %54, %v37
  %v56 = vpop.permute.xlu0 %55
  %57 = vset.pattern.permute.xlu0 0
  %58 = vperm.xlu0 %57, %v38
  %v59 = vpop.permute.xlu0 %58
  %60 = vset.pattern.permute.xlu0 0
  %61 = vperm.xlu0 %60, %v39
  %v62 = vpop.permute.xlu0 %61
  %63 = vset.pattern.permute.xlu0 0
  %64 = vperm.xlu0 %63, %v40
  %v65 = vpop.permute.xlu0 %64
  %vm66 = vcmp.eq.s32.totalorder %v53, %v56
  %vm67 = vcmp.eq.s32.totalorder %v53, %v59
  %vm68 = vcmp.eq.s32.totalorder %v53, %v62
  %vm69 = vcmp.eq.s32.totalorder %v53, %v65
  %v70 = vsel %vm66, 1, 0
  %v71 = vsel %vm67, 1, 0
  %v72 = vsel %vm68, 1, 0
  %v73 = vsel %vm69, 1, 0
  %v74 = vcvt.s32.f32 %v70
  %v75 = vcvt.s32.f32 %v71
  %v76 = vcvt.s32.f32 %v72
  %v77 = vcvt.s32.f32 %v73
  %v78 = vpack.c.bf16 %v75, %v74
  %v79 = vpack.c.bf16 %v77, %v76
  %v80 = vld [vmem:[%s3] sm:$0xf]
  %v81 = vld [vmem:[%s3 + $0x4] sm:$0xf]
  %v82 = vunpack.c.l.bf16 %v80
  %v83 = vunpack.c.l.bf16 %v81
  %v84 = vld [vmem:[%s4] sm:$0xf]
  %v85 = vld [vmem:[%s4 + $0x4] sm:$0xf]
  %v86 = vld [vmem:[%s4 + $0x8] sm:$0xf]
  %v87 = vld [vmem:[%s4 + $0xc] sm:$0xf]
  %v88 = vunpack.c.l.bf16 %v84
  %v89 = vunpack.c.l.bf16 %v85
  %v90 = vunpack.c.l.bf16 %v86
  %v91 = vunpack.c.l.bf16 %v87
  %v94 = vunpack.c.l.b16 %v80
  %v95 = vunpack.c.l.b16 %v81
  %v96 = vpack.c.b16 %v95, %v94
  %vm98 = vcmask 130048
  %v100 = vsel %vm98, %v78, 0
  %v103 = vsel %vm98, %v79, 0
  %105 = vmatpush.bf16.msra.mxu0 0
  %106 = vmatpush.bf16.msra.mxu0 0
  %107 = vmatpush.bf16.msra.mxu0 0
  %108 = vmatpush.bf16.msra.mxu0 0
  %109 = vmatpush.bf16.msra.mxu0 0
  %110 = vmatpush.bf16.msra.mxu0 0
  %111 = vmatpush.bf16.msra.mxu0 0
  %112 = vmatpush.bf16.msra.mxu0 %v96
  %113 = vmatmul.bf16.gmra.mxu0 %v100
  %v114 = vpop.f32.mrf.mxu0
  %v115 = vadd.f32 %v88, %v114
  %v116 = vpop.f32.mrf.mxu0
  %v117 = vadd.f32 %v89, %v116
  %118 = vmatmul.bf16.gmra.mxu0 %v103
  %v119 = vpop.f32.mrf.mxu0
  %v120 = vadd.f32 %v90, %v119
  %v121 = vpop.f32.mrf.mxu0
  %v122 = vadd.f32 %v91, %v121
  %123 = vdwg.mxu0
  %v124 = vpack.c.bf16 %v117, %v115
  %v125 = vpack.c.bf16 %v122, %v120
  %vm126 = vcmask 261120
  %v128 = vsel %vm126, %v51, 0
  %130 = vmatpush.bf16.msra.mxu0 0
  %131 = vmatpush.bf16.msra.mxu0 0
  %132 = vmatpush.bf16.msra.mxu0 0
  %133 = vmatpush.bf16.msra.mxu0 0
  %134 = vmatpush.bf16.msra.mxu0 0
  %135 = vmatpush.bf16.msra.mxu0 0
  %136 = vmatpush.bf16.msra.mxu0 %v125
  %137 = vmatpush.bf16.msra.mxu0 %v124
  %138 = vmatmul.bf16.gmra.mxu0 %v128
  %v139 = vpop.f32.mrf.mxu0
  %v140 = vadd.f32 %v82, %v139
  %v141 = vpop.f32.mrf.mxu0
  %v142 = vadd.f32 %v83, %v141
  %143 = vdwg.mxu0
  %v144 = vld [vmem:[%s5] sm:$0x1]
  %v146 = vperm.slane %v144, 0
  %v148 = vadd.f32 %v140, %v146
  %v149 = vadd.f32 %v142, %v146
  %v150 = vpack.c.bf16 %v149, %v148
  %v151 = vld [vmem:[%s6] sm:$0xf]
  %v152 = vld [vmem:[%s6 + $0x4] sm:$0xf]
  %v153 = vld [vmem:[%s6 + $0x8] sm:$0xf]
  %v154 = vld [vmem:[%s6 + $0xc] sm:$0xf]
  %v155 = vld [vmem:[%s6 + $0x10] sm:$0xf]
  %v156 = vld [vmem:[%s6 + $0x14] sm:$0xf]
  %v157 = vld [vmem:[%s6 + $0x18] sm:$0xf]
  %v158 = vld [vmem:[%s6 + $0x1c] sm:$0xf]
  %v159 = vld [vmem:[%s6 + $0x20] sm:$0xf]
  %v160 = vld [vmem:[%s6 + $0x24] sm:$0xf]
  %v161 = vld [vmem:[%s6 + $0x28] sm:$0xf]
  %v162 = vld [vmem:[%s6 + $0x2c] sm:$0xf]
  %v163 = vld [vmem:[%s6 + $0x30] sm:$0xf]
  %v164 = vld [vmem:[%s6 + $0x34] sm:$0xf]
  %v165 = vld [vmem:[%s6 + $0x38] sm:$0xf]
  %v166 = vld [vmem:[%s6 + $0x3c] sm:$0xf]
  %v167 = vld [vmem:[%s7] sm:$0x1]
  %v169 = vperm.slane %v167, 0
  %v187 = vunpack.c.l.b16 %v151
  %v188 = vunpack.c.l.b16 %v152
  %v189 = vunpack.c.l.b16 %v153
  %v190 = vunpack.c.l.b16 %v154
  %v191 = vunpack.c.l.b16 %v155
  %v192 = vunpack.c.l.b16 %v156
  %v193 = vunpack.c.l.b16 %v157
  %v194 = vunpack.c.l.b16 %v158
  %v195 = vunpack.c.l.b16 %v159
  %v196 = vunpack.c.l.b16 %v160
  %v197 = vunpack.c.l.b16 %v161
  %v198 = vunpack.c.l.b16 %v162
  %v199 = vunpack.c.l.b16 %v163
  %v200 = vunpack.c.l.b16 %v164
  %v201 = vunpack.c.l.b16 %v165
  %v202 = vunpack.c.l.b16 %v166
  %v203 = vpack.c.b16 %v188, %v187
  %v204 = vpack.c.b16 %v190, %v189
  %v205 = vpack.c.b16 %v192, %v191
  %v206 = vpack.c.b16 %v194, %v193
  %v207 = vpack.c.b16 %v196, %v195
  %v208 = vpack.c.b16 %v198, %v197
  %v209 = vpack.c.b16 %v200, %v199
  %v210 = vpack.c.b16 %v202, %v201
  %219 = vmatpush.bf16.msra.mxu0 %v210
  %220 = vmatpush.bf16.msra.mxu0 %v209
  %221 = vmatpush.bf16.msra.mxu0 %v208
  %222 = vmatpush.bf16.msra.mxu0 %v207
  %223 = vmatpush.bf16.msra.mxu0 %v206
  %224 = vmatpush.bf16.msra.mxu0 %v205
  %225 = vmatpush.bf16.msra.mxu0 %v204
  %226 = vmatpush.bf16.msra.mxu0 %v203
  %227 = vmatmul.bf16.gmra.mxu0 %v150
  %v228 = vpop.f32.mrf.mxu0
  %v229 = vadd.f32 %v169, %v228
  %v230 = vpop.f32.mrf.mxu0
  %v231 = vadd.f32 %v169, %v230
  %232 = vdwg.mxu0
  %v233 = vmax.f32 %v229, 0.0
  %v234 = vmax.f32 %v231, 0.0
  %v235 = vpack.c.bf16 %v234, %v233
  %v236 = vld [vmem:[%s8] sm:$0xf]
  %v237 = vld [vmem:[%s8 + $0x4] sm:$0xf]
  %v238 = vld [vmem:[%s8 + $0x8] sm:$0xf]
  %v239 = vld [vmem:[%s8 + $0xc] sm:$0xf]
  %v240 = vld [vmem:[%s8 + $0x10] sm:$0xf]
  %v241 = vld [vmem:[%s8 + $0x14] sm:$0xf]
  %v242 = vld [vmem:[%s8 + $0x18] sm:$0xf]
  %v243 = vld [vmem:[%s8 + $0x1c] sm:$0xf]
  %v244 = vld [vmem:[%s8 + $0x20] sm:$0xf]
  %v245 = vld [vmem:[%s8 + $0x24] sm:$0xf]
  %v246 = vld [vmem:[%s8 + $0x28] sm:$0xf]
  %v247 = vld [vmem:[%s8 + $0x2c] sm:$0xf]
  %v248 = vld [vmem:[%s8 + $0x30] sm:$0xf]
  %v249 = vld [vmem:[%s8 + $0x34] sm:$0xf]
  %v250 = vld [vmem:[%s8 + $0x38] sm:$0xf]
  %v251 = vld [vmem:[%s8 + $0x3c] sm:$0xf]
  %v252 = vld [vmem:[%s9] sm:$0x1]
  %v254 = vperm.slane %v252, 0
  %v272 = vunpack.c.l.b16 %v236
  %v273 = vunpack.c.l.b16 %v237
  %v274 = vunpack.c.l.b16 %v238
  %v275 = vunpack.c.l.b16 %v239
  %v276 = vunpack.c.l.b16 %v240
  %v277 = vunpack.c.l.b16 %v241
  %v278 = vunpack.c.l.b16 %v242
  %v279 = vunpack.c.l.b16 %v243
  %v280 = vunpack.c.l.b16 %v244
  %v281 = vunpack.c.l.b16 %v245
  %v282 = vunpack.c.l.b16 %v246
  %v283 = vunpack.c.l.b16 %v247
  %v284 = vunpack.c.l.b16 %v248
  %v285 = vunpack.c.l.b16 %v249
  %v286 = vunpack.c.l.b16 %v250
  %v287 = vunpack.c.l.b16 %v251
  %v288 = vpack.c.b16 %v273, %v272
  %v289 = vpack.c.b16 %v275, %v274
  %v290 = vpack.c.b16 %v277, %v276
  %v291 = vpack.c.b16 %v279, %v278
  %v292 = vpack.c.b16 %v281, %v280
  %v293 = vpack.c.b16 %v283, %v282
  %v294 = vpack.c.b16 %v285, %v284
  %v295 = vpack.c.b16 %v287, %v286
  %304 = vmatpush.bf16.msra.mxu0 %v295
  %305 = vmatpush.bf16.msra.mxu0 %v294
  %306 = vmatpush.bf16.msra.mxu0 %v293
  %307 = vmatpush.bf16.msra.mxu0 %v292
  %308 = vmatpush.bf16.msra.mxu0 %v291
  %309 = vmatpush.bf16.msra.mxu0 %v290
  %310 = vmatpush.bf16.msra.mxu0 %v289
  %311 = vmatpush.bf16.msra.mxu0 %v288
  %312 = vmatmul.bf16.gmra.mxu0 %v235
  %v313 = vpop.f32.mrf.mxu0
  %v314 = vadd.f32 %v254, %v313
  %v315 = vpop.f32.mrf.mxu0
  %v316 = vadd.f32 %v254, %v315
  %317 = vdwg.mxu0
  %v318 = vmax.f32 %v314, 0.0
  %v319 = vmax.f32 %v316, 0.0
  %v320 = vpack.c.bf16 %v319, %v318
  %s321 = scalar_lea.vmem %s4, 16
  %v322 = vld [vmem:[%s321] sm:$0xf]
  %v323 = vld [vmem:[%s321 + $0x4] sm:$0xf]
  %v324 = vld [vmem:[%s321 + $0x8] sm:$0xf]
  %v325 = vld [vmem:[%s321 + $0xc] sm:$0xf]
  %v326 = vunpack.c.l.bf16 %v322
  %v327 = vunpack.c.l.bf16 %v323
  %v328 = vunpack.c.l.bf16 %v324
  %v329 = vunpack.c.l.bf16 %v325
  %330 = vmatpush.bf16.msra.mxu0 0
  %331 = vmatpush.bf16.msra.mxu0 0
  %332 = vmatpush.bf16.msra.mxu0 0
  %333 = vmatpush.bf16.msra.mxu0 0
  %334 = vmatpush.bf16.msra.mxu0 0
  %335 = vmatpush.bf16.msra.mxu0 0
  %336 = vmatpush.bf16.msra.mxu0 0
  %337 = vmatpush.bf16.msra.mxu0 %v320
  %338 = vmatmul.bf16.gmra.mxu0 %v100
  %v339 = vpop.f32.mrf.mxu0
  %v340 = vadd.f32 %v326, %v339
  %v341 = vpop.f32.mrf.mxu0
  %v342 = vadd.f32 %v327, %v341
  %343 = vmatmul.bf16.gmra.mxu0 %v103
  %v344 = vpop.f32.mrf.mxu0
  %v345 = vadd.f32 %v328, %v344
  %v346 = vpop.f32.mrf.mxu0
  %v347 = vadd.f32 %v329, %v346
  %348 = vdwg.mxu0
  %v349 = vpack.c.bf16 %v342, %v340
  %v350 = vpack.c.bf16 %v347, %v345
  %351 = vmatpush.bf16.msra.mxu0 0
  %352 = vmatpush.bf16.msra.mxu0 0
  %353 = vmatpush.bf16.msra.mxu0 0
  %354 = vmatpush.bf16.msra.mxu0 0
  %355 = vmatpush.bf16.msra.mxu0 0
  %356 = vmatpush.bf16.msra.mxu0 0
  %357 = vmatpush.bf16.msra.mxu0 %v350
  %358 = vmatpush.bf16.msra.mxu0 %v349
  %359 = vmatmul.bf16.gmra.mxu0 %v128
  %v360 = vpop.f32.mrf.mxu0
  %v361 = vadd.f32 %v318, %v360
  %v362 = vpop.f32.mrf.mxu0
  %v363 = vadd.f32 %v319, %v362
  %364 = vdwg.mxu0
  %s365 = scalar_lea.vmem %s5, 1
  %v366 = vld [vmem:[%s365] sm:$0x1]
  %v368 = vperm.slane %v366, 0
  %v370 = vadd.f32 %v361, %v368
  %v371 = vadd.f32 %v363, %v368
  %v372 = vpack.c.bf16 %v371, %v370
  %s373 = scalar_lea.vmem %s6, 64
  %v374 = vld [vmem:[%s373] sm:$0xf]
  %v375 = vld [vmem:[%s373 + $0x4] sm:$0xf]
  %v376 = vld [vmem:[%s373 + $0x8] sm:$0xf]
  %v377 = vld [vmem:[%s373 + $0xc] sm:$0xf]
  %v378 = vld [vmem:[%s373 + $0x10] sm:$0xf]
  %v379 = vld [vmem:[%s373 + $0x14] sm:$0xf]
  %v380 = vld [vmem:[%s373 + $0x18] sm:$0xf]
  %v381 = vld [vmem:[%s373 + $0x1c] sm:$0xf]
  %v382 = vld [vmem:[%s373 + $0x20] sm:$0xf]
  %v383 = vld [vmem:[%s373 + $0x24] sm:$0xf]
  %v384 = vld [vmem:[%s373 + $0x28] sm:$0xf]
  %v385 = vld [vmem:[%s373 + $0x2c] sm:$0xf]
  %v386 = vld [vmem:[%s373 + $0x30] sm:$0xf]
  %v387 = vld [vmem:[%s373 + $0x34] sm:$0xf]
  %v388 = vld [vmem:[%s373 + $0x38] sm:$0xf]
  %v389 = vld [vmem:[%s373 + $0x3c] sm:$0xf]
  %s390 = scalar_lea.vmem %s7, 1
  %v391 = vld [vmem:[%s390] sm:$0x1]
  %v393 = vperm.slane %v391, 0
  %v411 = vunpack.c.l.b16 %v374
  %v412 = vunpack.c.l.b16 %v375
  %v413 = vunpack.c.l.b16 %v376
  %v414 = vunpack.c.l.b16 %v377
  %v415 = vunpack.c.l.b16 %v378
  %v416 = vunpack.c.l.b16 %v379
  %v417 = vunpack.c.l.b16 %v380
  %v418 = vunpack.c.l.b16 %v381
  %v419 = vunpack.c.l.b16 %v382
  %v420 = vunpack.c.l.b16 %v383
  %v421 = vunpack.c.l.b16 %v384
  %v422 = vunpack.c.l.b16 %v385
  %v423 = vunpack.c.l.b16 %v386
  %v424 = vunpack.c.l.b16 %v387
  %v425 = vunpack.c.l.b16 %v388
  %v426 = vunpack.c.l.b16 %v389
  %v427 = vpack.c.b16 %v412, %v411
  %v428 = vpack.c.b16 %v414, %v413
  %v429 = vpack.c.b16 %v416, %v415
  %v430 = vpack.c.b16 %v418, %v417
  %v431 = vpack.c.b16 %v420, %v419
  %v432 = vpack.c.b16 %v422, %v421
  %v433 = vpack.c.b16 %v424, %v423
  %v434 = vpack.c.b16 %v426, %v425
  %443 = vmatpush.bf16.msra.mxu0 %v434
  %444 = vmatpush.bf16.msra.mxu0 %v433
  %445 = vmatpush.bf16.msra.mxu0 %v432
  %446 = vmatpush.bf16.msra.mxu0 %v431
  %447 = vmatpush.bf16.msra.mxu0 %v430
  %448 = vmatpush.bf16.msra.mxu0 %v429
  %449 = vmatpush.bf16.msra.mxu0 %v428
  %450 = vmatpush.bf16.msra.mxu0 %v427
  %451 = vmatmul.bf16.gmra.mxu0 %v372
  %v452 = vpop.f32.mrf.mxu0
  %v453 = vadd.f32 %v393, %v452
  %v454 = vpop.f32.mrf.mxu0
  %v455 = vadd.f32 %v393, %v454
  %456 = vdwg.mxu0
  %v457 = vmax.f32 %v453, 0.0
  %v458 = vmax.f32 %v455, 0.0
  %v459 = vpack.c.bf16 %v458, %v457
  %s460 = scalar_lea.vmem %s8, 64
  %v461 = vld [vmem:[%s460] sm:$0xf]
  %v462 = vld [vmem:[%s460 + $0x4] sm:$0xf]
  %v463 = vld [vmem:[%s460 + $0x8] sm:$0xf]
  %v464 = vld [vmem:[%s460 + $0xc] sm:$0xf]
  %v465 = vld [vmem:[%s460 + $0x10] sm:$0xf]
  %v466 = vld [vmem:[%s460 + $0x14] sm:$0xf]
  %v467 = vld [vmem:[%s460 + $0x18] sm:$0xf]
  %v468 = vld [vmem:[%s460 + $0x1c] sm:$0xf]
  %v469 = vld [vmem:[%s460 + $0x20] sm:$0xf]
  %v470 = vld [vmem:[%s460 + $0x24] sm:$0xf]
  %v471 = vld [vmem:[%s460 + $0x28] sm:$0xf]
  %v472 = vld [vmem:[%s460 + $0x2c] sm:$0xf]
  %v473 = vld [vmem:[%s460 + $0x30] sm:$0xf]
  %v474 = vld [vmem:[%s460 + $0x34] sm:$0xf]
  %v475 = vld [vmem:[%s460 + $0x38] sm:$0xf]
  %v476 = vld [vmem:[%s460 + $0x3c] sm:$0xf]
  %s477 = scalar_lea.vmem %s9, 1
  %v478 = vld [vmem:[%s477] sm:$0x1]
  %v480 = vperm.slane %v478, 0
  %v498 = vunpack.c.l.b16 %v461
  %v499 = vunpack.c.l.b16 %v462
  %v500 = vunpack.c.l.b16 %v463
  %v501 = vunpack.c.l.b16 %v464
  %v502 = vunpack.c.l.b16 %v465
  %v503 = vunpack.c.l.b16 %v466
  %v504 = vunpack.c.l.b16 %v467
  %v505 = vunpack.c.l.b16 %v468
  %v506 = vunpack.c.l.b16 %v469
  %v507 = vunpack.c.l.b16 %v470
  %v508 = vunpack.c.l.b16 %v471
  %v509 = vunpack.c.l.b16 %v472
  %v510 = vunpack.c.l.b16 %v473
  %v511 = vunpack.c.l.b16 %v474
  %v512 = vunpack.c.l.b16 %v475
  %v513 = vunpack.c.l.b16 %v476
  %v514 = vpack.c.b16 %v499, %v498
  %v515 = vpack.c.b16 %v501, %v500
  %v516 = vpack.c.b16 %v503, %v502
  %v517 = vpack.c.b16 %v505, %v504
  %v518 = vpack.c.b16 %v507, %v506
  %v519 = vpack.c.b16 %v509, %v508
  %v520 = vpack.c.b16 %v511, %v510
  %v521 = vpack.c.b16 %v513, %v512
  %530 = vmatpush.bf16.msra.mxu0 %v521
  %531 = vmatpush.bf16.msra.mxu0 %v520
  %532 = vmatpush.bf16.msra.mxu0 %v519
  %533 = vmatpush.bf16.msra.mxu0 %v518
  %534 = vmatpush.bf16.msra.mxu0 %v517
  %535 = vmatpush.bf16.msra.mxu0 %v516
  %536 = vmatpush.bf16.msra.mxu0 %v515
  %537 = vmatpush.bf16.msra.mxu0 %v514
  %538 = vmatmul.bf16.gmra.mxu0 %v459
  %v539 = vpop.f32.mrf.mxu0
  %v540 = vadd.f32 %v480, %v539
  %v541 = vpop.f32.mrf.mxu0
  %v542 = vadd.f32 %v480, %v541
  %543 = vdwg.mxu0
  %v544 = vmax.f32 %v540, 0.0
  %v545 = vmax.f32 %v542, 0.0
  %v546 = vld [vmem:[%s2] sm:$0x1]
  %v547 = vperm.slane %v546, 0
  %vm548 = vcmp.eq.s32.totalorder %v42, %v547
  %vm549 = vcmp.eq.s32.totalorder %v43, %v547
  %v550 = vsel %vm548, 1, 0
  %v551 = vsel %vm549, 1, 0
  %v552 = vcvt.s32.f32 %v550
  %v553 = vcvt.s32.f32 %v551
  %v554 = vpack.c.bf16 %v553, %v552
  %v555 = vpack.c.bf16 %v545, %v544
  %v557 = vsel %vm98, %v554, 0
  %559 = vmatpush.bf16.msra.mxu0 0
  %560 = vmatpush.bf16.msra.mxu0 0
  %561 = vmatpush.bf16.msra.mxu0 0
  %562 = vmatpush.bf16.msra.mxu0 0
  %563 = vmatpush.bf16.msra.mxu0 0
  %564 = vmatpush.bf16.msra.mxu0 0
  %565 = vmatpush.bf16.msra.mxu0 0
  %566 = vmatpush.bf16.msra.mxu0 %v555
  %567 = vmatmul.bf16.gmra.mxu0 %v557
  %v568 = vpop.f32.mrf.mxu0
  %v569 = vadd.f32 0.0, %v568
  %v570 = vpop.f32.mrf.mxu0
  %v571 = vadd.f32 0.0, %v570
  %572 = vdwg.mxu0
  %573 = vst [vmem:[%s10] sm:$0xff] %v569
  %574 = vst [vmem:[%s10 + $0x8] sm:$0xff] %v571
  // Predicated region
  $region42: #{structure_extractor_forward.1} parent=0 // pred_check
    _
  $region43: #{structure_extractor_forward.1} parent=0 // pred_check_branch
    %576 = sbr.rel (0) target = $region45
  $region44: #{structure_extractor_forward.1} parent=0 // pred_region
    _
  $region45: #{structure_extractor_forward.1} parent=0 // pred_fallthru
    _
  // Predicated region
  $region46: #{structure_extractor_forward.1} parent=0 // pred_check
    _
  $region47: #{structure_extractor_forward.1} parent=0 // pred_check_branch
    %578 = sbr.rel (0) target = $region49
  $region48: #{structure_extractor_forward.1} parent=0 // pred_region
    _
  $region49: #{structure_extractor_forward.1} parent=0 // pred_fallthru
    _

</llo_original>
